<compile_context>
chip_gen: v7x
topology: tpu7x:2x2x1
jax: 0.10.0
libtpu: 0.0.40
codegen_flags: <defaults>
</compile_context>

<pallas_src>
import jax
import jax.numpy as jnp
from jax import lax
from jax.experimental import pallas as pl
from jax.experimental.pallas import tpu as pltpu

_VMEM = pltpu.MemorySpace.VMEM


def _mlp_kernel(x_ref, w1_ref, b1_ref, w2_ref, b2_ref, w3_ref, b3_ref, o_ref):
    # x_ref: (TB, D_in) tile of gt (batch on sublanes on input).
    x = x_ref[...]
    # h1^T = W1 @ x^T : contract D_in (axis 1 of both operands) -> (H, TB).
    # Batch lands on the 128-lane axis for every subsequent op.
    h1 = lax.dot_general(w1_ref[...], x, (((1,), (1,)), ((), ())),
                         preferred_element_type=jnp.float32) + b1_ref[...]
    h1 = jnp.maximum(h1, 0.0)                                    # ReLU
    h2 = jnp.dot(w2_ref[...], h1,
                 preferred_element_type=jnp.float32) + b2_ref[...]
    h2 = jnp.maximum(h2, 0.0)                                    # ReLU
    out = jnp.dot(w3_ref[...], h2,
                  preferred_element_type=jnp.float32) + b3_ref[...]
    o_ref[...] = out.astype(o_ref.dtype)                         # (D_out, TB)


def domain_specific_gt_forward(gt, params, *, block_b=None):
    """Pallas forward of DomainSpecificGT.

    gt:     (B, dynamics_input_shape) float32
    params: PyTorch-layout weights:
              w1 (H, Din),  b1 (H, 1)
              w2 (H, H),    b2 (H, 1)
              w3 (Dout, H), b3 (Dout, 1)
    block_b: None (default) -> single un-pipelined VMEM block (best for
             small/medium B).  Otherwise a multiple of 128 dividing B; only
             useful for very large batches (megacore / 2-TC sharding).
    """
    w1, b1, w2, b2, w3, b3 = (params["w1"], params["b1"], params["w2"],
                              params["b2"], params["w3"], params["b3"])
    B, d_in = gt.shape
    h = w1.shape[0]
    d_out = w3.shape[0]

    flops = 2 * B * (d_in * h + h * h + h * d_out)
    n_param = (d_in * h + h) + (h * h + h) + (h * d_out + d_out)
    cost = pl.CostEstimate(flops=flops, transcendentals=0,
                           bytes_accessed=4 * (B * d_in + B * d_out + n_param))

    if block_b is None or block_b >= B:
        # Single block: no grid, every operand is a full-array VMEM block.
        out_t = pl.pallas_call(
            _mlp_kernel,
            out_shape=jax.ShapeDtypeStruct((d_out, B), gt.dtype),
            in_specs=[pl.BlockSpec(memory_space=_VMEM)] * 7,
            out_specs=pl.BlockSpec(memory_space=_VMEM),
            cost_estimate=cost,
        )(gt, w1, b1, w2, b2, w3, b3)
    else:
        assert block_b % 128 == 0 and B % block_b == 0, (
            "block_b must be a multiple of 128 that divides B")
        full = lambda i: (0, 0)
        out_t = pl.pallas_call(
            _mlp_kernel,
            out_shape=jax.ShapeDtypeStruct((d_out, B), gt.dtype),
            grid=(B // block_b,),
            in_specs=[
                pl.BlockSpec((block_b, d_in), lambda i: (i, 0)),   # gt tile
                pl.BlockSpec((h, d_in), full),                     # w1
                pl.BlockSpec((h, 1), full),                        # b1
                pl.BlockSpec((h, h), full),                        # w2
                pl.BlockSpec((h, 1), full),                        # b2
                pl.BlockSpec((d_out, h), full),                    # w3
                pl.BlockSpec((d_out, 1), full),                    # b3
            ],
            out_specs=pl.BlockSpec((d_out, block_b), lambda i: (0, i)),
            compiler_params=pltpu.CompilerParams(
                dimension_semantics=("parallel",)),
            cost_estimate=cost,
        )(gt, w1, b1, w2, b2, w3, b3)

    return out_t.T                                 # back to (B, D_out)


def init_params(key, d_in, d_out, hidden=20):
    """Deterministic init mimicking torch.nn.Linear (uniform(-1/sqrt(fan_in), .))."""
    ks = jax.random.split(key, 6)

    def lin(kw, kb, fan_in, fan_out):
        bound = 1.0 / jnp.sqrt(float(fan_in))
        # PyTorch layout: weight (out, in); bias stored as (out, 1) column.
        w = jax.random.uniform(kw, (fan_out, fan_in), jnp.float32, -bound, bound)
        b = jax.random.uniform(kb, (fan_out, 1), jnp.float32, -bound, bound)
        return w, b

    w1, b1 = lin(ks[0], ks[1], d_in, hidden)
    w2, b2 = lin(ks[2], ks[3], hidden, hidden)
    w3, b3 = lin(ks[4], ks[5], hidden, d_out)
    return dict(w1=w1, b1=b1, w2=w2, b2=b2, w3=w3, b3=b3)


def reference_forward(gt, p):
    h1 = jnp.maximum(gt @ p["w1"].T + p["b1"].T, 0.0)
    h2 = jnp.maximum(h1 @ p["w2"].T + p["b2"].T, 0.0)
    return h2 @ p["w3"].T + p["b3"].T


if __name__ == "__main__":
    # Shapes consistent with the module:
    # dynamics_input_shape=16, dynamics_output_shape=8, hidden_dim=20, batch=64.
    B, D_IN, D_OUT, HIDDEN = 64, 16, 8, 20

    key = jax.random.PRNGKey(0)
    k_x, k_p, k_x2 = jax.random.split(key, 3)
    gt = jax.random.normal(k_x, (B, D_IN), jnp.float32)
    params = init_params(k_p, D_IN, D_OUT, HIDDEN)

    # Default single-block (no-grid) path.
    out = domain_specific_gt_forward(gt, params)
    out = jax.block_until_ready(out)
    ref = reference_forward(gt, params)
    assert out.shape == (B, D_OUT)
    assert jnp.allclose(out, ref, atol=1e-5, rtol=1e-5), "mismatch vs reference"

    # Lane-tiled grid path (for very large batches) — sanity-check it too.
    B2 = 256
    gt2 = jax.random.normal(k_x2, (B2, D_IN), jnp.float32)
    out2 = domain_specific_gt_forward(gt2, params, block_b=128)
    out2 = jax.block_until_ready(out2)
    ref2 = reference_forward(gt2, params)
    assert out2.shape == (B2, D_OUT)
    assert jnp.allclose(out2, ref2, atol=1e-5, rtol=1e-5), "grid path mismatch"

    print("KERNEL_OK")
</pallas_src>

<mosaic_0001>
module attributes {stable_mosaic.version = 11 : i64} {
  func.func @_mlp_kernel(%arg0: memref<64x16xf32, #tpu.memory_space<vmem>>, %arg1: memref<20x16xf32, #tpu.memory_space<vmem>>, %arg2: memref<20x1xf32, #tpu.memory_space<vmem>>, %arg3: memref<20x20xf32, #tpu.memory_space<vmem>>, %arg4: memref<20x1xf32, #tpu.memory_space<vmem>>, %arg5: memref<8x20xf32, #tpu.memory_space<vmem>>, %arg6: memref<8x1xf32, #tpu.memory_space<vmem>>, %arg7: memref<8x64xf32, #tpu.memory_space<vmem>>) attributes {dimension_semantics = [], scalar_prefetch = 0 : i64, scratch_operands = 0 : i64, tpu.core_type = #tpu.core_type<tc>} {
    %c0 = arith.constant 0 : index
    %c0_0 = arith.constant 0 : index
    %0 = vector.load %arg0[%c0, %c0_0] : memref<64x16xf32, #tpu.memory_space<vmem>>, vector<64x16xf32>
    %c0_1 = arith.constant 0 : index
    %c0_2 = arith.constant 0 : index
    %1 = vector.load %arg1[%c0_1, %c0_2] : memref<20x16xf32, #tpu.memory_space<vmem>>, vector<20x16xf32>
    %cst = arith.constant dense<0.000000e+00> : vector<20x64xf32>
    %2 = tpu.matmul %1, %0, %cst {dimension_numbers = #tpu.dot_dimension_numbers<[1], [1], [0], [0], [0, 0, 1, 0], [], []>} : vector<20x16xf32>, vector<64x16xf32>, vector<20x64xf32> -> vector<20x64xf32>
    %c0_3 = arith.constant 0 : index
    %c0_4 = arith.constant 0 : index
    %3 = vector.load %arg2[%c0_3, %c0_4] : memref<20x1xf32, #tpu.memory_space<vmem>>, vector<20x1xf32>
    %4 = vector.broadcast %3 : vector<20x1xf32> to vector<20x64xf32>
    %5 = arith.addf %2, %4 : vector<20x64xf32>
    %cst_5 = arith.constant 0.000000e+00 : f32
    %6 = vector.broadcast %cst_5 : f32 to vector<20x64xf32>
    %7 = arith.maximumf %5, %6 : vector<20x64xf32>
    %c0_6 = arith.constant 0 : index
    %c0_7 = arith.constant 0 : index
    %8 = vector.load %arg3[%c0_6, %c0_7] : memref<20x20xf32, #tpu.memory_space<vmem>>, vector<20x20xf32>
    %cst_8 = arith.constant dense<0.000000e+00> : vector<20x64xf32>
    %9 = tpu.matmul %8, %7, %cst_8 {dimension_numbers = #tpu.dot_dimension_numbers<[1], [0], [0], [1], [0, 0, 1, 1], [], []>} : vector<20x20xf32>, vector<20x64xf32>, vector<20x64xf32> -> vector<20x64xf32>
    %c0_9 = arith.constant 0 : index
    %c0_10 = arith.constant 0 : index
    %10 = vector.load %arg4[%c0_9, %c0_10] : memref<20x1xf32, #tpu.memory_space<vmem>>, vector<20x1xf32>
    %11 = vector.broadcast %10 : vector<20x1xf32> to vector<20x64xf32>
    %12 = arith.addf %9, %11 : vector<20x64xf32>
    %cst_11 = arith.constant 0.000000e+00 : f32
    %13 = vector.broadcast %cst_11 : f32 to vector<20x64xf32>
    %14 = arith.maximumf %12, %13 : vector<20x64xf32>
    %c0_12 = arith.constant 0 : index
    %c0_13 = arith.constant 0 : index
    %15 = vector.load %arg5[%c0_12, %c0_13] : memref<8x20xf32, #tpu.memory_space<vmem>>, vector<8x20xf32>
    %cst_14 = arith.constant dense<0.000000e+00> : vector<8x64xf32>
    %16 = tpu.matmul %15, %14, %cst_14 {dimension_numbers = #tpu.dot_dimension_numbers<[1], [0], [0], [1], [0, 0, 1, 1], [], []>} : vector<8x20xf32>, vector<20x64xf32>, vector<8x64xf32> -> vector<8x64xf32>
    %c0_15 = arith.constant 0 : index
    %c0_16 = arith.constant 0 : index
    %17 = vector.load %arg6[%c0_15, %c0_16] : memref<8x1xf32, #tpu.memory_space<vmem>>, vector<8x1xf32>
    %18 = vector.broadcast %17 : vector<8x1xf32> to vector<8x64xf32>
    %19 = arith.addf %16, %18 : vector<8x64xf32>
    %c0_17 = arith.constant 0 : index
    %c0_18 = arith.constant 0 : index
    %20 = vector.load %arg7[%c0_17, %c0_18] : memref<8x64xf32, #tpu.memory_space<vmem>>, vector<8x64xf32>
    tpu.vector_store %arg7[%c0_17, %c0_18], %19 {strides = array<i32>} : memref<8x64xf32, #tpu.memory_space<vmem>>, vector<8x64xf32>,
    return
  }
}

</mosaic_0001>

<llo_original>
// kernel: tpu_custom_call.1
$region0: #{tpu_custom_call.1}
  #allocation0 [shape = 'u32[]', space=smem, size = 0x4, offset = 0x4, fixed_abs, tag = 'smem constant byte address 0x4 - core index']
  #allocation1 [shape = 'u32[144,128]{1,0:T(1,128)}', space=vmem, size = 0x12000, scoped, tag = 'internal scratch']
  %s0 = inlined_call_operand.vmem [shape: f32[64,16], index: 0, kind: input, shape index: {}]
  %s1 = inlined_call_operand.vmem [shape: f32[20,16], index: 1, kind: input, shape index: {}]
  %s2 = inlined_call_operand.vmem [shape: f32[20,1], index: 2, kind: input, shape index: {}]
  %s3 = inlined_call_operand.vmem [shape: f32[20,20], index: 3, kind: input, shape index: {}]
  %s4 = inlined_call_operand.vmem [shape: f32[20,1], index: 4, kind: input, shape index: {}]
  %s5 = inlined_call_operand.vmem [shape: f32[8,20], index: 5, kind: input, shape index: {}]
  %s6 = inlined_call_operand.vmem [shape: f32[8,1], index: 6, kind: input, shape index: {}]
  %s7 = inlined_call_operand.hbm [shape: f32[8,64], index: 7, kind: output, shape index: {}]
  %s8 = sld [smem:[#allocation0]]
  $region38: #{tpu_custom_call.1} parent=0
    _
  %s10 = ssub.s32 1, %s8
  %s11 = scalar_select 0, %s10, %s8
  $region1: #{tpu_custom_call.1} parent=0
    #allocation2 [shape = 'u8[4096]{0}', space=vmem, size = 0x1000, scoped, tag = 'output window, operand 0, single buffered']
    #allocation3 [shape = 's32[1]{0}', space=sflag, size = 0x4, scoped, tag = 'scoped memory for tpu_custom_call.1']
    %12 = vsyncpa [#allocation3], 0
    // Predicated region
    $region2: #{tpu_custom_call.1} parent=1 // pred_check
      _
    $region3: #{tpu_custom_call.1} parent=1 // pred_check_branch
      %14 = sbr.rel (0) target = $region5
    $region4: #{tpu_custom_call.1} parent=1 // pred_region
      _
    $region5: #{tpu_custom_call.1} parent=1 // pred_fallthru
      _
    // Predicated region
    $region6: #{tpu_custom_call.1} parent=1 // pred_check
      _
    $region7: #{tpu_custom_call.1} parent=1 // pred_check_branch
      %16 = sbr.rel (0) target = $region9
    $region8: #{tpu_custom_call.1} parent=1 // pred_region
      _
    $region9: #{tpu_custom_call.1} parent=1 // pred_fallthru
      _
    // Predicated region
    $region10: #{tpu_custom_call.1} parent=1 // pred_check
      _
    $region11: #{tpu_custom_call.1} parent=1 // pred_check_branch
      %18 = sbr.rel (0) target = $region13
    $region12: #{tpu_custom_call.1} parent=1 // pred_region
      _
    $region13: #{tpu_custom_call.1} parent=1 // pred_fallthru
      _
    // Predicated region
    $region14: #{tpu_custom_call.1} parent=1 // pred_check
      _
    $region15: #{tpu_custom_call.1} parent=1 // pred_check_branch
      %20 = sbr.rel (0) target = $region17
    $region16: #{tpu_custom_call.1} parent=1 // pred_region
      _
    $region17: #{tpu_custom_call.1} parent=1 // pred_fallthru
      _
    // Predicated region
    $region18: #{tpu_custom_call.1} parent=1 // pred_check
      _
    $region19: #{tpu_custom_call.1} parent=1 // pred_check_branch
      %22 = sbr.rel (0) target = $region21
    $region20: #{tpu_custom_call.1} parent=1 // pred_region
      _
    $region21: #{tpu_custom_call.1} parent=1 // pred_fallthru
      _
    // Predicated region
    $region22: #{tpu_custom_call.1} parent=1 // pred_check
      _
    $region23: #{tpu_custom_call.1} parent=1 // pred_check_branch
      %24 = sbr.rel (0) target = $region25
    $region24: #{tpu_custom_call.1} parent=1 // pred_region
      _
    $region25: #{tpu_custom_call.1} parent=1 // pred_fallthru
      _
    // Predicated region
    $region26: #{tpu_custom_call.1} parent=1 // pred_check
      _
    $region27: #{tpu_custom_call.1} parent=1 // pred_check_branch
      %26 = sbr.rel (0) target = $region29
    $region28: #{tpu_custom_call.1} parent=1 // pred_region
      _
    $region29: #{tpu_custom_call.1} parent=1 // pred_fallthru
      _
    %v27 = vld [vmem:[%s0] sm:$0xff]
    %v28 = vld [vmem:[%s0 + $0x8] sm:$0xff]
    %v29 = vld [vmem:[%s0 + $0x10] sm:$0xff]
    %v30 = vld [vmem:[%s0 + $0x18] sm:$0xff]
    %v31 = vld [vmem:[%s0 + $0x20] sm:$0xff]
    %v32 = vld [vmem:[%s0 + $0x28] sm:$0xff]
    %v33 = vld [vmem:[%s0 + $0x30] sm:$0xff]
    %v34 = vld [vmem:[%s0 + $0x38] sm:$0xff]
    %v35 = vld [vmem:[%s1] sm:$0xff]
    %v36 = vld [vmem:[%s1 + $0x8] sm:$0xff]
    %v37 = vld [vmem:[%s1 + $0x10] sm:$0xf]
    %v38 = vld [vmem:[%s2] sm:$0xff]
    %v39 = vld [vmem:[%s2 + $0x8] sm:$0xff]
    %v40 = vld [vmem:[%s2 + $0x10] sm:$0xf]
    %42 = vset.pattern.permute.xlu0 0
    %43 = vperm.xlu0 %42, %v38
    %v44 = vpop.permute.xlu0 %43
    %47 = vset.pattern.permute.xlu0 0
    %48 = vperm.xlu0 %47, %v39
    %v49 = vpop.permute.xlu0 %48
    %52 = vset.pattern.permute.xlu0 0
    %53 = vperm.xlu0 %52, %v40
    %v54 = vpop.permute.xlu0 %53
    %vm56 = vcmask 130048
    %v58 = vsel %vm56, %v35, 0
    %v61 = vsel %vm56, %v36, 0
    %v64 = vsel %vm56, %v37, 0
    %v67 = vsel %vm56, %v27, 0
    %v70 = vsel %vm56, %v28, 0
    %v73 = vsel %vm56, %v29, 0
    %v76 = vsel %vm56, %v30, 0
    %v79 = vsel %vm56, %v31, 0
    %v82 = vsel %vm56, %v32, 0
    %v85 = vsel %vm56, %v33, 0
    %v88 = vsel %vm56, %v34, 0
    %90 = vmatprep.subr.mxu0 0.0
    %91 = vmatpush1.xpose.msra.mxu0 %v67
    %92 = vmatprep.subr.mxu0 0.0
    %93 = vmatpush1.xpose.msra.mxu0 %v70
    %94 = vmatprep.subr.mxu0 0.0
    %95 = vmatpush1.xpose.msra.mxu0 %v73
    %96 = vmatprep.subr.mxu0 0.0
    %97 = vmatpush1.xpose.msra.mxu0 %v76
    %98 = vmatprep.subr.mxu0 0.0
    %99 = vmatpush1.xpose.msra.mxu0 %v79
    %100 = vmatprep.subr.mxu0 0.0
    %101 = vmatpush1.xpose.msra.mxu0 %v82
    %102 = vmatprep.subr.mxu0 0.0
    %103 = vmatpush1.xpose.msra.mxu0 %v85
    %104 = vmatprep.subr.mxu0 0.0
    %105 = vmatpush1.xpose.msra.mxu0 %v88
    %106 = vmatprep.subr.mxu0 0.0
    %107 = vmatpush1.xpose.msra.mxu0 0.0
    %108 = vmatprep.subr.mxu0 0.0
    %109 = vmatpush1.xpose.msra.mxu0 0.0
    %110 = vmatprep.subr.mxu0 0.0
    %111 = vmatpush1.xpose.msra.mxu0 0.0
    %112 = vmatprep.subr.mxu0 0.0
    %113 = vmatpush1.xpose.msra.mxu0 0.0
    %114 = vmatprep.subr.mxu0 0.0
    %115 = vmatpush1.xpose.msra.mxu0 0.0
    %116 = vmatprep.subr.mxu0 0.0
    %117 = vmatpush1.xpose.msra.mxu0 0.0
    %118 = vmatprep.subr.mxu0 0.0
    %119 = vmatpush1.xpose.msra.mxu0 0.0
    %120 = vmatprep.subr.mxu0 0.0
    %121 = vmatpush1.xpose.msra.mxu0 0.0
    %122 = vmatprep.subr.mxu0 0.0
    %123 = vmatpush1.xpose.msra.mxu0 0.0
    %124 = vmatprep.subr.mxu0 0.0
    %125 = vmatpush1.xpose.msra.mxu0 0.0
    %126 = vmatprep.subr.mxu0 0.0
    %127 = vmatpush1.xpose.msra.mxu0 0.0
    %128 = vmatprep.subr.mxu0 0.0
    %129 = vmatpush1.xpose.msra.mxu0 0.0
    %130 = vmatprep.subr.mxu0 0.0
    %131 = vmatpush1.xpose.msra.mxu0 0.0
    %132 = vmatprep.subr.mxu0 0.0
    %133 = vmatpush1.xpose.msra.mxu0 0.0
    %134 = vmatprep.subr.mxu0 0.0
    %135 = vmatpush1.xpose.msra.mxu0 0.0
    %136 = vmatprep.subr.mxu0 0.0
    %137 = vmatpush1.xpose.msra.mxu0 0.0
    %138 = vmatprep.subr.mxu0 0.0
    %139 = vmatpush1.xpose.msra.mxu0 0.0
    %140 = vmatprep.subr.mxu0 0.0
    %141 = vmatpush1.xpose.msra.mxu0 0.0
    %142 = vmatprep.subr.mxu0 0.0
    %143 = vmatpush1.xpose.msra.mxu0 0.0
    %144 = vmatprep.subr.mxu0 0.0
    %145 = vmatpush1.xpose.msra.mxu0 0.0
    %146 = vmatprep.subr.mxu0 0.0
    %147 = vmatpush1.xpose.msra.mxu0 0.0
    %148 = vmatprep.subr.mxu0 0.0
    %149 = vmatpush1.xpose.msra.mxu0 0.0
    %150 = vmatprep.subr.mxu0 0.0
    %151 = vmatpush1.xpose.msra.mxu0 0.0
    %152 = vmatprep.subr.mxu0 0.0
    %153 = vmatpush1.xpose.msra.mxu0 0.0
    %154 = vmatprep.mubr.f32.mxu0 0.0
    %155 = vmatmul.mubr.f32.gmra.mrb[0].mxu0 %v58
    %v156 = vpop.f32.mrb[0].mxu0
    %v157 = vadd.f32 %v44, %v156
    %v158 = vpop.f32.mrb[0].mxu0
    %159 = vmatprep.mubr.f32.mxu0 0.0
    %160 = vmatmul.mubr.f32.gmra.mrb[0].mxu0 %v61
    %v161 = vpop.f32.mrb[0].mxu0
    %v162 = vadd.f32 %v49, %v161
    %v163 = vpop.f32.mrb[0].mxu0
    %164 = vmatprep.mubr.f32.mxu0 0.0
    %165 = vmatmul.mubr.f32.gmra.mrb[0].mxu0 %v64
    %v166 = vpop.f32.mrb[0].mxu0
    %v167 = vadd.f32 %v54, %v166
    %v168 = vpop.f32.mrb[0].mxu0
    %169 = vdwg.mxu0
    %v170 = vmax.f32 %v157, 0.0
    %v171 = vmax.f32 %v162, 0.0
    %v172 = vmax.f32 %v167, 0.0
    %v173 = vld [vmem:[%s3] sm:$0xff]
    %v174 = vld [vmem:[%s3 + $0x8] sm:$0xff]
    %v175 = vld [vmem:[%s3 + $0x10] sm:$0xf]
    %v176 = vld [vmem:[%s4] sm:$0xff]
    %v177 = vld [vmem:[%s4 + $0x8] sm:$0xff]
    %v178 = vld [vmem:[%s4 + $0x10] sm:$0xf]
    %180 = vset.pattern.permute.xlu0 0
    %181 = vperm.xlu0 %180, %v176
    %v182 = vpop.permute.xlu0 %181
    %185 = vset.pattern.permute.xlu0 0
    %186 = vperm.xlu0 %185, %v177
    %v187 = vpop.permute.xlu0 %186
    %190 = vset.pattern.permute.xlu0 0
    %191 = vperm.xlu0 %190, %v178
    %v192 = vpop.permute.xlu0 %191
    %vm194 = vcmask 162816
    %v196 = vsel %vm194, %v173, 0
    %v199 = vsel %vm194, %v174, 0
    %v202 = vsel %vm194, %v175, 0
    %vm204 = vcmask 1043456
    %v206 = vsel %vm204, %v172, 0
    %208 = vmatprep.subr.mxu0 0.0
    %209 = vmatpush1.msra.mxu0 %v170
    %210 = vmatprep.subr.mxu0 0.0
    %211 = vmatpush1.msra.mxu0 %v171
    %212 = vmatprep.subr.mxu0 0.0
    %213 = vmatpush1.msra.mxu0 %v206
    %214 = vmatprep.subr.mxu0 0.0
    %215 = vmatpush1.msra.mxu0 0.0
    %216 = vmatprep.subr.mxu0 0.0
    %217 = vmatpush1.msra.mxu0 0.0
    %218 = vmatprep.subr.mxu0 0.0
    %219 = vmatpush1.msra.mxu0 0.0
    %220 = vmatprep.subr.mxu0 0.0
    %221 = vmatpush1.msra.mxu0 0.0
    %222 = vmatprep.subr.mxu0 0.0
    %223 = vmatpush1.msra.mxu0 0.0
    %224 = vmatprep.subr.mxu0 0.0
    %225 = vmatpush1.msra.mxu0 0.0
    %226 = vmatprep.subr.mxu0 0.0
    %227 = vmatpush1.msra.mxu0 0.0
    %228 = vmatprep.subr.mxu0 0.0
    %229 = vmatpush1.msra.mxu0 0.0
    %230 = vmatprep.subr.mxu0 0.0
    %231 = vmatpush1.msra.mxu0 0.0
    %232 = vmatprep.subr.mxu0 0.0
    %233 = vmatpush1.msra.mxu0 0.0
    %234 = vmatprep.subr.mxu0 0.0
    %235 = vmatpush1.msra.mxu0 0.0
    %236 = vmatprep.subr.mxu0 0.0
    %237 = vmatpush1.msra.mxu0 0.0
    %238 = vmatprep.subr.mxu0 0.0
    %239 = vmatpush1.msra.mxu0 0.0
    %240 = vmatprep.subr.mxu0 0.0
    %241 = vmatpush1.msra.mxu0 0.0
    %242 = vmatprep.subr.mxu0 0.0
    %243 = vmatpush1.msra.mxu0 0.0
    %244 = vmatprep.subr.mxu0 0.0
    %245 = vmatpush1.msra.mxu0 0.0
    %246 = vmatprep.subr.mxu0 0.0
    %247 = vmatpush1.msra.mxu0 0.0
    %248 = vmatprep.subr.mxu0 0.0
    %249 = vmatpush1.msra.mxu0 0.0
    %250 = vmatprep.subr.mxu0 0.0
    %251 = vmatpush1.msra.mxu0 0.0
    %252 = vmatprep.subr.mxu0 0.0
    %253 = vmatpush1.msra.mxu0 0.0
    %254 = vmatprep.subr.mxu0 0.0
    %255 = vmatpush1.msra.mxu0 0.0
    %256 = vmatprep.subr.mxu0 0.0
    %257 = vmatpush1.msra.mxu0 0.0
    %258 = vmatprep.subr.mxu0 0.0
    %259 = vmatpush1.msra.mxu0 0.0
    %260 = vmatprep.subr.mxu0 0.0
    %261 = vmatpush1.msra.mxu0 0.0
    %262 = vmatprep.subr.mxu0 0.0
    %263 = vmatpush1.msra.mxu0 0.0
    %264 = vmatprep.subr.mxu0 0.0
    %265 = vmatpush1.msra.mxu0 0.0
    %266 = vmatprep.subr.mxu0 0.0
    %267 = vmatpush1.msra.mxu0 0.0
    %268 = vmatprep.subr.mxu0 0.0
    %269 = vmatpush1.msra.mxu0 0.0
    %270 = vmatprep.subr.mxu0 0.0
    %271 = vmatpush1.msra.mxu0 0.0
    %272 = vmatprep.mubr.f32.mxu0 0.0
    %273 = vmatmul.mubr.f32.gmra.mrb[0].mxu0 %v196
    %v274 = vpop.f32.mrb[0].mxu0
    %v275 = vadd.f32 %v182, %v274
    %v276 = vpop.f32.mrb[0].mxu0
    %277 = vmatprep.mubr.f32.mxu0 0.0
    %278 = vmatmul.mubr.f32.gmra.mrb[0].mxu0 %v199
    %v279 = vpop.f32.mrb[0].mxu0
    %v280 = vadd.f32 %v187, %v279
    %v281 = vpop.f32.mrb[0].mxu0
    %282 = vmatprep.mubr.f32.mxu0 0.0
    %283 = vmatmul.mubr.f32.gmra.mrb[0].mxu0 %v202
    %v284 = vpop.f32.mrb[0].mxu0
    %v285 = vadd.f32 %v192, %v284
    %v286 = vpop.f32.mrb[0].mxu0
    %287 = vdwg.mxu0
    %v288 = vmax.f32 %v275, 0.0
    %v289 = vmax.f32 %v280, 0.0
    %v290 = vmax.f32 %v285, 0.0
    %v291 = vld [vmem:[%s5] sm:$0xff]
    %v292 = vld [vmem:[%s6] sm:$0xff]
    %294 = vset.pattern.permute.xlu0 0
    %295 = vperm.xlu0 %294, %v292
    %v296 = vpop.permute.xlu0 %295
    %v299 = vsel %vm194, %v291, 0
    %v302 = vsel %vm204, %v290, 0
    %304 = vmatprep.subr.mxu0 0.0
    %305 = vmatpush1.msra.mxu0 %v288
    %306 = vmatprep.subr.mxu0 0.0
    %307 = vmatpush1.msra.mxu0 %v289
    %308 = vmatprep.subr.mxu0 0.0
    %309 = vmatpush1.msra.mxu0 %v302
    %310 = vmatprep.subr.mxu0 0.0
    %311 = vmatpush1.msra.mxu0 0.0
    %312 = vmatprep.subr.mxu0 0.0
    %313 = vmatpush1.msra.mxu0 0.0
    %314 = vmatprep.subr.mxu0 0.0
    %315 = vmatpush1.msra.mxu0 0.0
    %316 = vmatprep.subr.mxu0 0.0
    %317 = vmatpush1.msra.mxu0 0.0
    %318 = vmatprep.subr.mxu0 0.0
    %319 = vmatpush1.msra.mxu0 0.0
    %320 = vmatprep.subr.mxu0 0.0
    %321 = vmatpush1.msra.mxu0 0.0
    %322 = vmatprep.subr.mxu0 0.0
    %323 = vmatpush1.msra.mxu0 0.0
    %324 = vmatprep.subr.mxu0 0.0
    %325 = vmatpush1.msra.mxu0 0.0
    %326 = vmatprep.subr.mxu0 0.0
    %327 = vmatpush1.msra.mxu0 0.0
    %328 = vmatprep.subr.mxu0 0.0
    %329 = vmatpush1.msra.mxu0 0.0
    %330 = vmatprep.subr.mxu0 0.0
    %331 = vmatpush1.msra.mxu0 0.0
    %332 = vmatprep.subr.mxu0 0.0
    %333 = vmatpush1.msra.mxu0 0.0
    %334 = vmatprep.subr.mxu0 0.0
    %335 = vmatpush1.msra.mxu0 0.0
    %336 = vmatprep.subr.mxu0 0.0
    %337 = vmatpush1.msra.mxu0 0.0
    %338 = vmatprep.subr.mxu0 0.0
    %339 = vmatpush1.msra.mxu0 0.0
    %340 = vmatprep.subr.mxu0 0.0
    %341 = vmatpush1.msra.mxu0 0.0
    %342 = vmatprep.subr.mxu0 0.0
    %343 = vmatpush1.msra.mxu0 0.0
    %344 = vmatprep.subr.mxu0 0.0
    %345 = vmatpush1.msra.mxu0 0.0
    %346 = vmatprep.subr.mxu0 0.0
    %347 = vmatpush1.msra.mxu0 0.0
    %348 = vmatprep.subr.mxu0 0.0
    %349 = vmatpush1.msra.mxu0 0.0
    %350 = vmatprep.subr.mxu0 0.0
    %351 = vmatpush1.msra.mxu0 0.0
    %352 = vmatprep.subr.mxu0 0.0
    %353 = vmatpush1.msra.mxu0 0.0
    %354 = vmatprep.subr.mxu0 0.0
    %355 = vmatpush1.msra.mxu0 0.0
    %356 = vmatprep.subr.mxu0 0.0
    %357 = vmatpush1.msra.mxu0 0.0
    %358 = vmatprep.subr.mxu0 0.0
    %359 = vmatpush1.msra.mxu0 0.0
    %360 = vmatprep.subr.mxu0 0.0
    %361 = vmatpush1.msra.mxu0 0.0
    %362 = vmatprep.subr.mxu0 0.0
    %363 = vmatpush1.msra.mxu0 0.0
    %364 = vmatprep.subr.mxu0 0.0
    %365 = vmatpush1.msra.mxu0 0.0
    %366 = vmatprep.subr.mxu0 0.0
    %367 = vmatpush1.msra.mxu0 0.0
    %368 = vmatprep.mubr.f32.mxu0 0.0
    %369 = vmatmul.mubr.f32.gmra.mrb[0].mxu0 %v299
    %v370 = vpop.f32.mrb[0].mxu0
    %v371 = vadd.f32 %v296, %v370
    %v372 = vpop.f32.mrb[0].mxu0
    %373 = vdwg.mxu0
    %vm374 = vcmask 523264
    %375 = vst.msk [vmem:[#allocation2] sm:$0xff] %vm374, %v371
    // Predicated region
    $region30: #{tpu_custom_call.1} parent=1 // pred_check
      _
    $region31: #{tpu_custom_call.1} parent=1 // pred_check_branch
      %377 = sbr.rel (0) target = $region33
    $region32: #{tpu_custom_call.1} parent=1 // pred_region
      %s379 = ssub.s32 128, 128
      %380 = vsyncadd [#allocation3], %s379
      %s382 = sshll.u32 [#allocation2], 4
      %s383 = int_to_ptr.vmem [resolvable:$true] %s382
      %385 = dma.vmem_to_hbm [thread:$0]  %s383, 128, %s7, [#allocation3]
    $region33: #{tpu_custom_call.1} parent=1 // pred_fallthru
      _
    // Predicated region
    $region34: #{tpu_custom_call.1} parent=1 // pred_check
      _
    $region35: #{tpu_custom_call.1} parent=1 // pred_check_branch
      %387 = sbr.rel (0) target = $region37
    $region36: #{tpu_custom_call.1} parent=1 // pred_region
      %388 = dma.done [#allocation3], 128
    $region37: #{tpu_custom_call.1} parent=1 // pred_fallthru
      _
    %389 = vsyncpa [#allocation3], 1

</llo_original>
